<compile_context>
chip_gen: v6e
topology: v6e:2x2x1
jax: 0.10.0
libtpu: 0.0.40
codegen_flags: <defaults>
</compile_context>

<pallas_src>
import functools

import jax
import jax.numpy as jnp
from jax.experimental import pallas as pl
from jax.experimental.pallas import tpu as pltpu


def _mlp_kernel(layer_dims, x_ref, p_ref, o_ref):
    """Fused MLP forward, batch on lanes.

    x_ref : [in_dim, block_n]            input activations (batch on lanes)
    p_ref : [sum(out_i), max(in_i) + 1]  packed (weight | bias) slab, resident
    o_ref : [out_dim, block_n]           output (lane-dense)
    """
    n_layers = len(layer_dims) - 1
    h = x_ref[...].astype(jnp.float32)
    row = 0
    for i in range(n_layers):
        d_in, d_out = layer_dims[i], layer_dims[i + 1]
        w = p_ref[row:row + d_out, 0:d_in]             # [d_out, d_in]
        b = p_ref[row:row + d_out, d_in:d_in + 1]      # [d_out, 1]
        row += d_out
        if d_in <= 8:
            # Tiny-K layer (e.g. the 2-feature input layer): broadcasted VPU
            # FMAs instead of a <1%-utilized MXU matmul with push/pop latency.
            acc = w[:, 0:1] * h[0:1, :]
            for k in range(1, d_in):
                acc = acc + w[:, k:k + 1] * h[k:k + 1, :]
            h = acc + b
        else:
            h = jnp.dot(w, h, preferred_element_type=jnp.float32) + b
        if i < n_layers - 1:               # tanh on all layers except the last
            h = jnp.tanh(h)
    o_ref[...] = h.astype(o_ref.dtype)


def pack_params(weights, biases):
    """Pack per-layer (W [out,in], b [out]) into one [sum(out), max(in)+1] slab.

    Column layout per layer block: [ W (d_in cols) | b (1 col) | zero pad ].
    """
    max_in = max(w.shape[1] for w in weights)
    blocks = []
    for w, b in zip(weights, biases):
        d_out, d_in = w.shape
        blk = jnp.zeros((d_out, max_in + 1), dtype=jnp.float32)
        blk = blk.at[:, :d_in].set(w.astype(jnp.float32))
        blk = blk.at[:, d_in].set(b.astype(jnp.float32))
        blocks.append(blk)
    return jnp.concatenate(blocks, axis=0)


def mlp_forward(x, weights, biases, *, block_n=512):
    """Net.forward: x [N, F] -> [N, out].  tanh(Linear) x (L-1), final Linear."""
    assert block_n % 128 == 0, "block_n must be a multiple of 128 (lane width)"
    n, in_dim = x.shape
    layer_dims = (in_dim,) + tuple(w.shape[0] for w in weights)
    out_dim = layer_dims[-1]

    # Lane-dense layout: batch on the last (lane) axis.  Pad the batch to a
    # multiple of block_n; padded columns are computed on and sliced off.
    n_pad = pl.cdiv(n, block_n) * block_n
    xt = jnp.zeros((in_dim, n_pad), dtype=x.dtype).at[:, :n].set(x.T)

    slab = pack_params(weights, biases)
    r, c = slab.shape

    kernel = functools.partial(_mlp_kernel, layer_dims)
    out_t = pl.pallas_call(
        kernel,
        out_shape=jax.ShapeDtypeStruct((out_dim, n_pad), x.dtype),
        grid_spec=pltpu.PrefetchScalarGridSpec(
            num_scalar_prefetch=0,
            grid=(n_pad // block_n,),
            in_specs=[
                pl.BlockSpec((in_dim, block_n), lambda i: (0, i)),
                pl.BlockSpec((r, c), lambda i: (0, 0)),   # resident param slab
            ],
            out_specs=pl.BlockSpec((out_dim, block_n), lambda i: (0, i)),
        ),
        compiler_params=pltpu.CompilerParams(
            dimension_semantics=("parallel",)),
    )(xt, slab)

    return out_t[:, :n].T


def init_params(key, layers):
    """Xavier-normal weights (gain=1), zero biases — matches _initialize_weights.

    Weights are stored in PyTorch's nn.Linear layout: [out_features, in_features].
    """
    weights, biases = [], []
    for i in range(len(layers) - 1):
        key, sub = jax.random.split(key)
        fan_in, fan_out = layers[i], layers[i + 1]
        std = (2.0 / (fan_in + fan_out)) ** 0.5
        w = std * jax.random.normal(sub, (fan_out, fan_in), dtype=jnp.float32)
        b = jnp.zeros((fan_out,), dtype=jnp.float32)
        weights.append(w)
        biases.append(b)
    return weights, biases


def mlp_reference(x, weights, biases):
    h = x
    for i, (w, b) in enumerate(zip(weights, biases)):
        h = h @ w.T + b
        if i < len(weights) - 1:
            h = jnp.tanh(h)
    return h


if __name__ == "__main__":
    key = jax.random.PRNGKey(0)
    # DAE-style PINN net: 2 inputs (x, t), a few hidden layers, 1 output.
    layers = [2, 32, 32, 32, 1]
    batch = 1000   # deliberately NOT a multiple of the tile -> exercises padding

    key, kx = jax.random.split(key)
    x = jax.random.normal(kx, (batch, layers[0]), dtype=jnp.float32)
    weights, biases = init_params(key, layers)

    out = mlp_forward(x, weights, biases, block_n=512)   # grid = 2 tiles
    out = jax.block_until_ready(out)

    ref = mlp_reference(x, weights, biases)
    assert out.shape == (batch, layers[-1])
    assert jnp.allclose(out, ref, atol=1e-5, rtol=1e-5), "mismatch vs reference"

    # TODO(synk): a fused custom_vjp backward kernel (same resident-weight
    # layout) would be the next win for full PINN training loops.
    print("KERNEL_OK")
</pallas_src>

<mosaic_0001>
module attributes {stable_mosaic.version = 11 : i64} {
  func.func @_mlp_kernel(%arg0: i32, %arg1: memref<2x512xf32, #tpu.memory_space<vmem>>, %arg2: memref<97x33xf32, #tpu.memory_space<vmem>>, %arg3: memref<1x512xf32, #tpu.memory_space<vmem>>) attributes {dimension_semantics = [#tpu.dimension_semantics<parallel>], iteration_bounds = array<i64: 2>, scalar_prefetch = 0 : i64, scratch_operands = 0 : i64, tpu.core_type = #tpu.core_type<tc>, window_params = [{transform_indices = @transform_0, window_bounds = array<i64: 2, 512>}, {pipeline_mode = #tpu.pipeline_mode<synchronous>, transform_indices = @transform_1, window_bounds = array<i64: 97, 33>}, {transform_indices = @transform_2, window_bounds = array<i64: 1, 512>}]} {
    %c0 = arith.constant 0 : index
    %c0_0 = arith.constant 0 : index
    %0 = vector.load %arg1[%c0, %c0_0] : memref<2x512xf32, #tpu.memory_space<vmem>>, vector<2x512xf32>
    %c0_1 = arith.constant 0 : index
    %c0_2 = arith.constant 0 : index
    %1 = vector.load %arg2[%c0_1, %c0_2] : memref<97x33xf32, #tpu.memory_space<vmem>>, vector<32x2xf32>
    %c0_3 = arith.constant 0 : index
    %c2 = arith.constant 2 : index
    %2 = vector.load %arg2[%c0_3, %c2] : memref<97x33xf32, #tpu.memory_space<vmem>>, vector<32x1xf32>
    %3 = vector.extract_strided_slice %1 {offsets = [0, 0], sizes = [32, 1], strides = [1, 1]} : vector<32x2xf32> to vector<32x1xf32>
    %4 = vector.extract_strided_slice %0 {offsets = [0, 0], sizes = [1, 512], strides = [1, 1]} : vector<2x512xf32> to vector<1x512xf32>
    %5 = vector.broadcast %3 : vector<32x1xf32> to vector<32x512xf32>
    %6 = vector.broadcast %4 : vector<1x512xf32> to vector<32x512xf32>
    %7 = arith.mulf %5, %6 : vector<32x512xf32>
    %8 = vector.extract_strided_slice %1 {offsets = [0, 1], sizes = [32, 1], strides = [1, 1]} : vector<32x2xf32> to vector<32x1xf32>
    %9 = vector.extract_strided_slice %0 {offsets = [1, 0], sizes = [1, 512], strides = [1, 1]} : vector<2x512xf32> to vector<1x512xf32>
    %10 = vector.broadcast %8 : vector<32x1xf32> to vector<32x512xf32>
    %11 = vector.broadcast %9 : vector<1x512xf32> to vector<32x512xf32>
    %12 = arith.mulf %10, %11 : vector<32x512xf32>
    %13 = arith.addf %7, %12 : vector<32x512xf32>
    %14 = vector.broadcast %2 : vector<32x1xf32> to vector<32x512xf32>
    %15 = arith.addf %13, %14 : vector<32x512xf32>
    %16 = math.tanh %15 : vector<32x512xf32>
    %c32 = arith.constant 32 : index
    %c0_4 = arith.constant 0 : index
    %17 = vector.load %arg2[%c32, %c0_4] : memref<97x33xf32, #tpu.memory_space<vmem>>, vector<32x32xf32>
    %c32_5 = arith.constant 32 : index
    %c32_6 = arith.constant 32 : index
    %18 = vector.load %arg2[%c32_5, %c32_6] : memref<97x33xf32, #tpu.memory_space<vmem>>, vector<32x1xf32>
    %cst = arith.constant dense<0.000000e+00> : vector<32x512xf32>
    %19 = tpu.matmul %17, %16, %cst {dimension_numbers = #tpu.dot_dimension_numbers<[1], [0], [0], [1], [0, 0, 1, 1], [], []>} : vector<32x32xf32>, vector<32x512xf32>, vector<32x512xf32> -> vector<32x512xf32>
    %20 = vector.broadcast %18 : vector<32x1xf32> to vector<32x512xf32>
    %21 = arith.addf %19, %20 : vector<32x512xf32>
    %22 = math.tanh %21 : vector<32x512xf32>
    %c64 = arith.constant 64 : index
    %c0_7 = arith.constant 0 : index
    %23 = vector.load %arg2[%c64, %c0_7] : memref<97x33xf32, #tpu.memory_space<vmem>>, vector<32x32xf32>
    %c64_8 = arith.constant 64 : index
    %c32_9 = arith.constant 32 : index
    %24 = vector.load %arg2[%c64_8, %c32_9] : memref<97x33xf32, #tpu.memory_space<vmem>>, vector<32x1xf32>
    %cst_10 = arith.constant dense<0.000000e+00> : vector<32x512xf32>
    %25 = tpu.matmul %23, %22, %cst_10 {dimension_numbers = #tpu.dot_dimension_numbers<[1], [0], [0], [1], [0, 0, 1, 1], [], []>} : vector<32x32xf32>, vector<32x512xf32>, vector<32x512xf32> -> vector<32x512xf32>
    %26 = vector.broadcast %24 : vector<32x1xf32> to vector<32x512xf32>
    %27 = arith.addf %25, %26 : vector<32x512xf32>
    %28 = math.tanh %27 : vector<32x512xf32>
    %c96 = arith.constant 96 : index
    %c0_11 = arith.constant 0 : index
    %29 = vector.load %arg2[%c96, %c0_11] : memref<97x33xf32, #tpu.memory_space<vmem>>, vector<1x32xf32>
    %c96_12 = arith.constant 96 : index
    %c32_13 = arith.constant 32 : index
    %30 = vector.load %arg2[%c96_12, %c32_13] : memref<97x33xf32, #tpu.memory_space<vmem>>, vector<1x1xf32>
    %cst_14 = arith.constant dense<0.000000e+00> : vector<1x512xf32>
    %31 = tpu.matmul %29, %28, %cst_14 {dimension_numbers = #tpu.dot_dimension_numbers<[1], [0], [0], [1], [0, 0, 1, 1], [], []>} : vector<1x32xf32>, vector<32x512xf32>, vector<1x512xf32> -> vector<1x512xf32>
    %32 = vector.broadcast %30 : vector<1x1xf32> to vector<1x512xf32>
    %33 = arith.addf %31, %32 : vector<1x512xf32>
    %c0_15 = arith.constant 0 : index
    %c0_16 = arith.constant 0 : index
    %34 = vector.load %arg3[%c0_15, %c0_16] : memref<1x512xf32, #tpu.memory_space<vmem>>, vector<1x512xf32>
    tpu.vector_store %arg3[%c0_15, %c0_16], %33 {strides = array<i32>} : memref<1x512xf32, #tpu.memory_space<vmem>>, vector<1x512xf32>,
    return
  }
  func.func @transform_0(%arg0: i32) -> (i32, i32) {
    %c0_i32 = arith.constant 0 : i32
    %c0_i32_0 = arith.constant 0 : i32
    return %c0_i32, %arg0 : i32, i32
  }
  func.func @transform_1(%arg0: i32) -> (i32, i32) {
    %c0_i32 = arith.constant 0 : i32
    %c0_i32_0 = arith.constant 0 : i32
    %c0_i32_1 = arith.constant 0 : i32
    return %c0_i32, %c0_i32_0 : i32, i32
  }
  func.func @transform_2(%arg0: i32) -> (i32, i32) {
    %c0_i32 = arith.constant 0 : i32
    %c0_i32_0 = arith.constant 0 : i32
    return %c0_i32, %arg0 : i32, i32
  }
}

</mosaic_0001>

<llo_original>
// kernel: tpu_custom_call.1
$region0: #{tpu_custom_call.1}
  #allocation0 [shape = 'u32[]', space=smem, size = 0x4, offset = 0x4, fixed_abs, tag = 'smem constant byte address 0x4 - core index']
  #allocation1 [shape = 'u32[144,128]{1,0:T(1,128)}', space=vmem, size = 0x12000, scoped, tag = 'internal scratch']
  %s0 = inlined_call_operand.vmem [shape: f32[2,1024], index: 0, kind: input, shape index: {}]
  %s1 = inlined_call_operand.vmem [shape: f32[97,33], index: 1, kind: input, shape index: {}]
  %s2 = inlined_call_operand.hbm [shape: f32[1,1024], index: 2, kind: output, shape index: {}]
  %s3 = sld [smem:[#allocation0]]
  $region41: #{tpu_custom_call.1} parent=0
    _
  %s5 = ssub.s32 1, %s3
  %s6 = scalar_select 0, %s5, %s3
  $region1: #{tpu_custom_call.1} parent=0
    #allocation2 [shape = 'u8[4096]{0}', space=vmem, size = 0x1000, scoped, tag = 'output window, operand 0']
    #allocation3 [shape = 's32[2]{0}', space=sflag, size = 0x8, scoped, tag = 'scoped memory for tpu_custom_call.1']
    %7 = vsyncpa [#allocation3], 0
    %s8 = scalar_lea.sflag [#allocation3], 1
    %9 = vsyncpa %s8, 0
    loop: start=0, step=1, limit=4
    $region2: #{tpu_custom_call.1} parent=1 // loop_pre_header
      _
    $region3: #{tpu_custom_call.1} parent=1 // loop_header
      %s11 = sphi 0, %s15
      %p12 = scmp.ge.s32.totalorder %s11, 4
      %s21 = sphi 0, %s23
      %s24 = sphi 0, %s21
      %s25 = sphi 0, %s24
      %s41 = sphi 0, %s25
      %s45 = sphi 0, %s45
      %s47 = sphi 0, %s45
      %s48 = sphi 0, %s47
      %s62 = sphi 0, %s48
      %s68 = sphi 0, %s70
      %s71 = sphi 0, %s68
      %s72 = sphi 0, %s71
      %s88 = sphi 0, %s72
    $region4: #{tpu_custom_call.1} parent=1 // loop_header_branch
      %14 = sbr.rel (%p12) target = $region8
    $region5: #{tpu_custom_call.1} parent=1 // loop_body
      %s16 = ssub.s32 %s11, 1
      %s17 = ssub.s32 %s11, 2
      %s18 = sadd.s32 %s11, 1
      %s19 = ssub.s32 %s11, %s18
      %p20 = scmp.eq.s32.totalorder %s19, 0
      %s22 = sadd.s32 %s21, 1
      %s23 = scalar_select %p20, %s21, %s22
      %p26 = pneg %p20
      %p27 = scmp.eq.s32.totalorder %s11, 1
      %p28 = por %p26, %p27
      %p29 = scmp.ne.s32.totalorder %s21, %s24
      %p30 = scmp.eq.s32.totalorder %s11, 0
      %p31 = por %p29, %p30
      %p32 = scmp.ne.s32.totalorder %s21, %s24
      %p33 = scmp.eq.s32.totalorder %s16, 1
      %p34 = por %p32, %p33
      %p35 = scmp.ne.s32.totalorder %s24, %s25
      %p36 = scmp.eq.s32.totalorder %s16, 0
      %p37 = por %p35, %p36
      %p38 = scmp.ne.s32.totalorder %s24, %s25
      %p39 = scmp.eq.s32.totalorder %s17, 1
      %p40 = por %p38, %p39
      %p42 = scmp.ne.s32.totalorder %s25, %s41
      %p43 = scmp.eq.s32.totalorder %s17, 0
      %p44 = por %p42, %p43
      %s46 = sadd.s32 %s45, 1
      %p49 = scmp.eq.s32.totalorder %s11, 1
      %p50 = scmp.ne.s32.totalorder %s45, %s47
      %p51 = scmp.eq.s32.totalorder %s11, 0
      %p52 = por %p50, %p51
      %p53 = scmp.ne.s32.totalorder %s45, %s47
      %p54 = scmp.eq.s32.totalorder %s16, 1
      %p55 = por %p53, %p54
      %p56 = scmp.ne.s32.totalorder %s47, %s48
      %p57 = scmp.eq.s32.totalorder %s16, 0
      %p58 = por %p56, %p57
      %p59 = scmp.ne.s32.totalorder %s47, %s48
      %p60 = scmp.eq.s32.totalorder %s17, 1
      %p61 = por %p59, %p60
      %p63 = scmp.ne.s32.totalorder %s48, %s62
      %p64 = scmp.eq.s32.totalorder %s17, 0
      %p65 = por %p63, %p64
      %s66 = ssub.s32 %s11, %s18
      %p67 = scmp.eq.s32.totalorder %s66, 0
      %s69 = sadd.s32 %s68, 1
      %s70 = scalar_select %p67, %s68, %s69
      %p73 = pneg %p67
      %p74 = scmp.eq.s32.totalorder %s11, 1
      %p75 = por %p73, %p74
      %p76 = scmp.ne.s32.totalorder %s68, %s71
      %p77 = scmp.eq.s32.totalorder %s11, 0
      %p78 = por %p76, %p77
      %p79 = scmp.ne.s32.totalorder %s68, %s71
      %p80 = scmp.eq.s32.totalorder %s16, 1
      %p81 = por %p79, %p80
      %p82 = scmp.ne.s32.totalorder %s71, %s72
      %p83 = scmp.eq.s32.totalorder %s16, 0
      %p84 = por %p82, %p83
      %p85 = scmp.ne.s32.totalorder %s71, %s72
      %p86 = scmp.eq.s32.totalorder %s17, 1
      %p87 = por %p85, %p86
      %p89 = scmp.ne.s32.totalorder %s72, %s88
      %p90 = scmp.eq.s32.totalorder %s17, 0
      %p91 = por %p89, %p90
      %p92 = scmp.le.s32.totalorder 1, %s11
      %p93 = scmp.lt.s32.totalorder %s11, 3
      %p94 = pnand %p92, %p93
      %p95 = pneg %p94
      // Predicated region
      $region9: #{tpu_custom_call.1} parent=5 // pred_check
        _
      $region10: #{tpu_custom_call.1} parent=5 // pred_check_branch
        %97 = sbr.rel (%p94) target = $region12
      $region11: #{tpu_custom_call.1} parent=5 // pred_region
        %s98 = ssub.s32 %s11, 1
        // Predicated region
        $region13: #{tpu_custom_call.1} parent=11 // pred_check
          %p99 = pneg %p58
        $region14: #{tpu_custom_call.1} parent=11 // pred_check_branch
          %101 = sbr.rel (%p99) target = $region16
        $region15: #{tpu_custom_call.1} parent=11 // pred_region
          _
        $region16: #{tpu_custom_call.1} parent=11 // pred_fallthru
          _
      $region12: #{tpu_custom_call.1} parent=5 // pred_fallthru
        _
      %p102 = scmp.lt.s32.totalorder %s11, 2
      // Predicated region
      $region17: #{tpu_custom_call.1} parent=5 // pred_check
        %p103 = pneg %p102
      $region18: #{tpu_custom_call.1} parent=5 // pred_check_branch
        %105 = sbr.rel (%p103) target = $region20
      $region19: #{tpu_custom_call.1} parent=5 // pred_region
        // Predicated region
        $region21: #{tpu_custom_call.1} parent=19 // pred_check
          %p106 = pneg %p31
        $region22: #{tpu_custom_call.1} parent=19 // pred_check_branch
          %108 = sbr.rel (%p106) target = $region24
        $region23: #{tpu_custom_call.1} parent=19 // pred_region
          %s109 = smul.u32 4, %s11
          %p110 = scmp.lt.s32.totalorder %s109, 7
          %s111 = scalar_select %p110, %s109, 7
          %s112 = smul.addr %s111, 2
          %s113 = scalar_lea.vmem %s0, %s112
          %s114 = smul.u32 4, %s11
        $region24: #{tpu_custom_call.1} parent=19 // pred_fallthru
          _
      $region20: #{tpu_custom_call.1} parent=5 // pred_fallthru
        _
      %p115 = scmp.le.s32.totalorder 1, %s11
      %p116 = scmp.lt.s32.totalorder %s11, 3
      %p117 = pnand %p115, %p116
      %p118 = pneg %p117
      // Predicated region
      $region25: #{tpu_custom_call.1} parent=5 // pred_check
        _
      $region26: #{tpu_custom_call.1} parent=5 // pred_check_branch
        %120 = sbr.rel (%p117) target = $region28
      $region27: #{tpu_custom_call.1} parent=5 // pred_region
        %s121 = ssub.s32 %s11, 1
        %s122 = smul.u32 4, %s16
        %p123 = scmp.lt.s32.totalorder %s122, 7
        %s124 = scalar_select %p123, %s122, 7
        %s125 = smul.addr %s124, 2
        %s126 = scalar_lea.vmem %s0, %s125
        %p127 = pneg %p37
        %p128 = pneg %p34
        %p129 = pneg %p58
        %p130 = pneg %p55
        %p131 = pneg %p84
        %p132 = pneg %p81
        %s133 = sand.u32 %s71, 1
        %s134 = scalar_lea.sflag [#allocation3], %s133
        %s135 = sand.u32 %s71, 1
        %s136 = smul.addr %s135, 4
        %s137 = scalar_lea.vmem [#allocation2], %s136
        %s138 = smul.u32 4, %s16
        %p139 = scmp.lt.s32.totalorder %s138, 7
        %s140 = scalar_select %p139, %s138, 7
        %s141 = smul.addr %s140, 2
        %s142 = scalar_lea.vmem %s0, %s141
        %s143 = smul.u32 4, %s16
        %s144 = smul.u32 4, %s16
        %v145 = vld [vmem:[%s142] sm:$0xff]
        %v146 = vld [vmem:[%s1] sm:$0xff]
        %v147 = vld [vmem:[%s1 + $0x8] sm:$0xff]
        %v148 = vld [vmem:[%s1 + $0x10] sm:$0xff]
        %v149 = vld [vmem:[%s1 + $0x18] sm:$0xff]
        %151 = vset.pattern.permute.xlu0 0
        %152 = vperm.xlu0 %151, %v146
        %v153 = vpop.permute.xlu0 %152
        %156 = vset.pattern.permute.xlu0 0
        %157 = vperm.xlu0 %156, %v147
        %v158 = vpop.permute.xlu0 %157
        %161 = vset.pattern.permute.xlu0 0
        %162 = vperm.xlu0 %161, %v148
        %v163 = vpop.permute.xlu0 %162
        %166 = vset.pattern.permute.xlu0 0
        %167 = vperm.xlu0 %166, %v149
        %v168 = vpop.permute.xlu0 %167
        %v171 = vlaneseq
        %v172 = vshrl.u32 %v171, 7
        %v173 = vsub.s32 0, %v172
        %v174 = vrot.slane %v145, %v173
        %v175 = vlaneseq
        %v176 = vshrl.u32 %v175, 7
        %v177 = vsub.s32 2, %v176
        %v178 = vrot.slane %v145, %v177
        %v179 = vlaneseq
        %v180 = vshrl.u32 %v179, 7
        %v181 = vsub.s32 4, %v180
        %v182 = vrot.slane %v145, %v181
        %v183 = vlaneseq
        %v184 = vshrl.u32 %v183, 7
        %v185 = vsub.s32 6, %v184
        %v186 = vrot.slane %v145, %v185
        %v191 = vlaneseq
        %v192 = vshrl.u32 %v191, 7
        %v193 = vsub.s32 0, %v192
        %v194 = vrot.slane %v174, %v193
        %v195 = vlaneseq
        %v196 = vshrl.u32 %v195, 7
        %v197 = vsub.s32 0, %v196
        %v198 = vrot.slane %v178, %v197
        %v199 = vlaneseq
        %v200 = vshrl.u32 %v199, 7
        %v201 = vsub.s32 0, %v200
        %v202 = vrot.slane %v182, %v201
        %v203 = vlaneseq
        %v204 = vshrl.u32 %v203, 7
        %v205 = vsub.s32 0, %v204
        %v206 = vrot.slane %v186, %v205
        %v207 = vmul.f32 %v153, %v194
        %v208 = vmul.f32 %v153, %v198
        %v209 = vmul.f32 %v153, %v202
        %v210 = vmul.f32 %v153, %v206
        %v211 = vmul.f32 %v158, %v194
        %v212 = vmul.f32 %v158, %v198
        %v213 = vmul.f32 %v158, %v202
        %v214 = vmul.f32 %v158, %v206
        %v215 = vmul.f32 %v163, %v194
        %v216 = vmul.f32 %v163, %v198
        %v217 = vmul.f32 %v163, %v202
        %v218 = vmul.f32 %v163, %v206
        %v219 = vmul.f32 %v168, %v194
        %v220 = vmul.f32 %v168, %v198
        %v221 = vmul.f32 %v168, %v202
        %v222 = vmul.f32 %v168, %v206
        %223 = vset.pattern.permute.xlu0 1
        %224 = vperm.xlu0 %223, %v146
        %v225 = vpop.permute.xlu0 %224
        %227 = vset.pattern.permute.xlu0 1
        %228 = vperm.xlu0 %227, %v147
        %v229 = vpop.permute.xlu0 %228
        %231 = vset.pattern.permute.xlu0 1
        %232 = vperm.xlu0 %231, %v148
        %v233 = vpop.permute.xlu0 %232
        %235 = vset.pattern.permute.xlu0 1
        %236 = vperm.xlu0 %235, %v149
        %v237 = vpop.permute.xlu0 %236
        %v239 = vlaneseq
        %v240 = vshrl.u32 %v239, 7
        %v241 = vsub.s32 1, %v240
        %v242 = vrot.slane %v145, %v241
        %v243 = vlaneseq
        %v244 = vshrl.u32 %v243, 7
        %v245 = vsub.s32 3, %v244
        %v246 = vrot.slane %v145, %v245
        %v247 = vlaneseq
        %v248 = vshrl.u32 %v247, 7
        %v249 = vsub.s32 5, %v248
        %v250 = vrot.slane %v145, %v249
        %v251 = vlaneseq
        %v252 = vshrl.u32 %v251, 7
        %v253 = vsub.s32 7, %v252
        %v254 = vrot.slane %v145, %v253
        %v259 = vlaneseq
        %v260 = vshrl.u32 %v259, 7
        %v261 = vsub.s32 1, %v260
        %v262 = vrot.slane %v242, %v261
        %v263 = vlaneseq
        %v264 = vshrl.u32 %v263, 7
        %v265 = vsub.s32 1, %v264
        %v266 = vrot.slane %v246, %v265
        %v267 = vlaneseq
        %v268 = vshrl.u32 %v267, 7
        %v269 = vsub.s32 1, %v268
        %v270 = vrot.slane %v250, %v269
        %v271 = vlaneseq
        %v272 = vshrl.u32 %v271, 7
        %v273 = vsub.s32 1, %v272
        %v274 = vrot.slane %v254, %v273
        %v275 = vmul.f32 %v225, %v262
        %v276 = vmul.f32 %v225, %v266
        %v277 = vmul.f32 %v225, %v270
        %v278 = vmul.f32 %v225, %v274
        %v279 = vmul.f32 %v229, %v262
        %v280 = vmul.f32 %v229, %v266
        %v281 = vmul.f32 %v229, %v270
        %v282 = vmul.f32 %v229, %v274
        %v283 = vmul.f32 %v233, %v262
        %v284 = vmul.f32 %v233, %v266
        %v285 = vmul.f32 %v233, %v270
        %v286 = vmul.f32 %v233, %v274
        %v287 = vmul.f32 %v237, %v262
        %v288 = vmul.f32 %v237, %v266
        %v289 = vmul.f32 %v237, %v270
        %v290 = vmul.f32 %v237, %v274
        %v291 = vadd.f32 %v207, %v275
        %v292 = vadd.f32 %v208, %v276
        %v293 = vadd.f32 %v209, %v277
        %v294 = vadd.f32 %v210, %v278
        %v295 = vadd.f32 %v211, %v279
        %v296 = vadd.f32 %v212, %v280
        %v297 = vadd.f32 %v213, %v281
        %v298 = vadd.f32 %v214, %v282
        %v299 = vadd.f32 %v215, %v283
        %v300 = vadd.f32 %v216, %v284
        %v301 = vadd.f32 %v217, %v285
        %v302 = vadd.f32 %v218, %v286
        %v303 = vadd.f32 %v219, %v287
        %v304 = vadd.f32 %v220, %v288
        %v305 = vadd.f32 %v221, %v289
        %v306 = vadd.f32 %v222, %v290
        %307 = vset.pattern.permute.xlu0 2
        %308 = vperm.xlu0 %307, %v146
        %v309 = vpop.permute.xlu0 %308
        %311 = vset.pattern.permute.xlu0 2
        %312 = vperm.xlu0 %311, %v147
        %v313 = vpop.permute.xlu0 %312
        %315 = vset.pattern.permute.xlu0 2
        %316 = vperm.xlu0 %315, %v148
        %v317 = vpop.permute.xlu0 %316
        %319 = vset.pattern.permute.xlu0 2
        %320 = vperm.xlu0 %319, %v149
        %v321 = vpop.permute.xlu0 %320
        %v323 = vadd.f32 %v291, %v309
        %v324 = vadd.f32 %v292, %v309
        %v325 = vadd.f32 %v293, %v309
        %v326 = vadd.f32 %v294, %v309
        %v327 = vadd.f32 %v295, %v313
        %v328 = vadd.f32 %v296, %v313
        %v329 = vadd.f32 %v297, %v313
        %v330 = vadd.f32 %v298, %v313
        %v331 = vadd.f32 %v299, %v317
        %v332 = vadd.f32 %v300, %v317
        %v333 = vadd.f32 %v301, %v317
        %v334 = vadd.f32 %v302, %v317
        %v335 = vadd.f32 %v303, %v321
        %v336 = vadd.f32 %v304, %v321
        %v337 = vadd.f32 %v305, %v321
        %v338 = vadd.f32 %v306, %v321
        %v339 = vtanh.pop %v323
        %v340 = vtanh.pop %v324
        %v341 = vtanh.pop %v325
        %v342 = vtanh.pop %v326
        %v343 = vtanh.pop %v327
        %v344 = vtanh.pop %v328
        %v345 = vtanh.pop %v329
        %v346 = vtanh.pop %v330
        %v347 = vtanh.pop %v331
        %v348 = vtanh.pop %v332
        %v349 = vtanh.pop %v333
        %v350 = vtanh.pop %v334
        %v351 = vtanh.pop %v335
        %v352 = vtanh.pop %v336
        %v353 = vtanh.pop %v337
        %v354 = vtanh.pop %v338
        %v355 = vld [vmem:[%s1 + $0x20] sm:$0xff]
        %v356 = vld [vmem:[%s1 + $0x28] sm:$0xff]
        %v357 = vld [vmem:[%s1 + $0x30] sm:$0xff]
        %v358 = vld [vmem:[%s1 + $0x38] sm:$0xff]
        %360 = vset.pattern.permute.xlu0 32
        %361 = vperm.xlu0 %360, %v355
        %v362 = vpop.permute.xlu0 %361
        %365 = vset.pattern.permute.xlu0 32
        %366 = vperm.xlu0 %365, %v356
        %v367 = vpop.permute.xlu0 %366
        %370 = vset.pattern.permute.xlu0 32
        %371 = vperm.xlu0 %370, %v357
        %v372 = vpop.permute.xlu0 %371
        %375 = vset.pattern.permute.xlu0 32
        %376 = vperm.xlu0 %375, %v358
        %v377 = vpop.permute.xlu0 %376
        %vm379 = vcmask 261120
        %v380 = vsel %vm379, %v355, 0
        %v382 = vsel %vm379, %v356, 0
        %v384 = vsel %vm379, %v357, 0
        %v386 = vsel %vm379, %v358, 0
        %388 = vmatprep.subr.mxu0 0.0
        %389 = vmatpush1.msra.mxu0 0.0
        %390 = vmatprep.subr.mxu0 0.0
        %391 = vmatpush1.msra.mxu0 0.0
        %392 = vmatprep.subr.mxu0 0.0
        %393 = vmatpush1.msra.mxu0 0.0
        %394 = vmatprep.subr.mxu0 0.0
        %395 = vmatpush1.msra.mxu0 0.0
        %396 = vmatprep.subr.mxu0 0.0
        %397 = vmatpush1.msra.mxu0 0.0
        %398 = vmatprep.subr.mxu0 0.0
        %399 = vmatpush1.msra.mxu0 0.0
        %400 = vmatprep.subr.mxu0 0.0
        %401 = vmatpush1.msra.mxu0 0.0
        %402 = vmatprep.subr.mxu0 0.0
        %403 = vmatpush1.msra.mxu0 0.0
        %404 = vmatprep.subr.mxu0 0.0
        %405 = vmatpush1.msra.mxu0 0.0
        %406 = vmatprep.subr.mxu0 0.0
        %407 = vmatpush1.msra.mxu0 0.0
        %408 = vmatprep.subr.mxu0 0.0
        %409 = vmatpush1.msra.mxu0 0.0
        %410 = vmatprep.subr.mxu0 0.0
        %411 = vmatpush1.msra.mxu0 0.0
        %412 = vmatprep.subr.mxu0 %v352
        %413 = vmatpush1.msra.mxu0 %v351
        %414 = vmatprep.subr.mxu0 %v348
        %415 = vmatpush1.msra.mxu0 %v347
        %416 = vmatprep.subr.mxu0 %v344
        %417 = vmatpush1.msra.mxu0 %v343
        %418 = vmatprep.subr.mxu0 %v340
        %419 = vmatpush1.msra.mxu0 %v339
        %420 = vmatprep.subr.mxu0 0.0
        %421 = vmatpush2.msra.mxu0 0.0
        %422 = vmatprep.subr.mxu0 0.0
        %423 = vmatpush2.msra.mxu0 0.0
        %424 = vmatprep.subr.mxu0 0.0
        %425 = vmatpush2.msra.mxu0 0.0
        %426 = vmatprep.subr.mxu0 0.0
        %427 = vmatpush2.msra.mxu0 0.0
        %428 = vmatprep.subr.mxu0 0.0
        %429 = vmatpush2.msra.mxu0 0.0
        %430 = vmatprep.subr.mxu0 0.0
        %431 = vmatpush2.msra.mxu0 0.0
        %432 = vmatprep.subr.mxu0 0.0
        %433 = vmatpush2.msra.mxu0 0.0
        %434 = vmatprep.subr.mxu0 0.0
        %435 = vmatpush2.msra.mxu0 0.0
        %436 = vmatprep.subr.mxu0 0.0
        %437 = vmatpush2.msra.mxu0 0.0
        %438 = vmatprep.subr.mxu0 0.0
        %439 = vmatpush2.msra.mxu0 0.0
        %440 = vmatprep.subr.mxu0 0.0
        %441 = vmatpush2.msra.mxu0 0.0
        %442 = vmatprep.subr.mxu0 0.0
        %443 = vmatpush2.msra.mxu0 0.0
        %444 = vmatprep.subr.mxu0 0.0
        %445 = vmatpush2.msra.mxu0 0.0
        %446 = vmatprep.subr.mxu0 0.0
        %447 = vmatpush2.msra.mxu0 0.0
        %448 = vmatprep.subr.mxu0 0.0
        %449 = vmatpush2.msra.mxu0 0.0
        %450 = vmatprep.subr.mxu0 0.0
        %451 = vmatpush2.msra.mxu0 0.0
        %452 = vmatprep.mubr.f32.mxu0 0.0
        %453 = vmatmul.mubr.f32.gmra.mxu0 %v380
        %v454 = vpop.f32.mrf.mxu0
        %v455 = vadd.f32 %v362, %v454
        %v456 = vpop.f32.mrf.mxu0
        %v457 = vadd.f32 %v362, %v456
        %458 = vmatprep.mubr.f32.mxu0 0.0
        %459 = vmatmul.mubr.f32.gmra.mxu0 %v382
        %v460 = vpop.f32.mrf.mxu0
        %v461 = vadd.f32 %v367, %v460
        %v462 = vpop.f32.mrf.mxu0
        %v463 = vadd.f32 %v367, %v462
        %464 = vmatprep.mubr.f32.mxu0 0.0
        %465 = vmatmul.mubr.f32.gmra.mxu0 %v384
        %v466 = vpop.f32.mrf.mxu0
        %v467 = vadd.f32 %v372, %v466
        %v468 = vpop.f32.mrf.mxu0
        %v469 = vadd.f32 %v372, %v468
        %470 = vmatprep.mubr.f32.mxu0 0.0
        %471 = vmatmul.mubr.f32.gmra.mxu0 %v386
        %v472 = vpop.f32.mrf.mxu0
        %v473 = vadd.f32 %v377, %v472
        %v474 = vpop.f32.mrf.mxu0
        %v475 = vadd.f32 %v377, %v474
        %476 = vdwg.mxu0
        %477 = vmatprep.subr.mxu0 0.0
        %478 = vmatpush1.msra.mxu0 0.0
        %479 = vmatprep.subr.mxu0 0.0
        %480 = vmatpush1.msra.mxu0 0.0
        %481 = vmatprep.subr.mxu0 0.0
        %482 = vmatpush1.msra.mxu0 0.0
        %483 = vmatprep.subr.mxu0 0.0
        %484 = vmatpush1.msra.mxu0 0.0
        %485 = vmatprep.subr.mxu0 0.0
        %486 = vmatpush1.msra.mxu0 0.0
        %487 = vmatprep.subr.mxu0 0.0
        %488 = vmatpush1.msra.mxu0 0.0
        %489 = vmatprep.subr.mxu0 0.0
        %490 = vmatpush1.msra.mxu0 0.0
        %491 = vmatprep.subr.mxu0 0.0
        %492 = vmatpush1.msra.mxu0 0.0
        %493 = vmatprep.subr.mxu0 0.0
        %494 = vmatpush1.msra.mxu0 0.0
        %495 = vmatprep.subr.mxu0 0.0
        %496 = vmatpush1.msra.mxu0 0.0
        %497 = vmatprep.subr.mxu0 0.0
        %498 = vmatpush1.msra.mxu0 0.0
        %499 = vmatprep.subr.mxu0 0.0
        %500 = vmatpush1.msra.mxu0 0.0
        %501 = vmatprep.subr.mxu0 %v354
        %502 = vmatpush1.msra.mxu0 %v353
        %503 = vmatprep.subr.mxu0 %v350
        %504 = vmatpush1.msra.mxu0 %v349
        %505 = vmatprep.subr.mxu0 %v346
        %506 = vmatpush1.msra.mxu0 %v345
        %507 = vmatprep.subr.mxu0 %v342
        %508 = vmatpush1.msra.mxu0 %v341
        %509 = vmatprep.subr.mxu0 0.0
        %510 = vmatpush2.msra.mxu0 0.0
        %511 = vmatprep.subr.mxu0 0.0
        %512 = vmatpush2.msra.mxu0 0.0
        %513 = vmatprep.subr.mxu0 0.0
        %514 = vmatpush2.msra.mxu0 0.0
        %515 = vmatprep.subr.mxu0 0.0
        %516 = vmatpush2.msra.mxu0 0.0
        %517 = vmatprep.subr.mxu0 0.0
        %518 = vmatpush2.msra.mxu0 0.0
        %519 = vmatprep.subr.mxu0 0.0
        %520 = vmatpush2.msra.mxu0 0.0
        %521 = vmatprep.subr.mxu0 0.0
        %522 = vmatpush2.msra.mxu0 0.0
        %523 = vmatprep.subr.mxu0 0.0
        %524 = vmatpush2.msra.mxu0 0.0
        %525 = vmatprep.subr.mxu0 0.0
        %526 = vmatpush2.msra.mxu0 0.0
        %527 = vmatprep.subr.mxu0 0.0
        %528 = vmatpush2.msra.mxu0 0.0
        %529 = vmatprep.subr.mxu0 0.0
        %530 = vmatpush2.msra.mxu0 0.0
        %531 = vmatprep.subr.mxu0 0.0
        %532 = vmatpush2.msra.mxu0 0.0
        %533 = vmatprep.subr.mxu0 0.0
        %534 = vmatpush2.msra.mxu0 0.0
        %535 = vmatprep.subr.mxu0 0.0
        %536 = vmatpush2.msra.mxu0 0.0
        %537 = vmatprep.subr.mxu0 0.0
        %538 = vmatpush2.msra.mxu0 0.0
        %539 = vmatprep.subr.mxu0 0.0
        %540 = vmatpush2.msra.mxu0 0.0
        %541 = vmatprep.mubr.f32.mxu0 0.0
        %542 = vmatmul.mubr.f32.gmra.mxu0 %v380
        %v543 = vpop.f32.mrf.mxu0
        %v544 = vadd.f32 %v362, %v543
        %v545 = vpop.f32.mrf.mxu0
        %v546 = vadd.f32 %v362, %v545
        %547 = vmatprep.mubr.f32.mxu0 0.0
        %548 = vmatmul.mubr.f32.gmra.mxu0 %v382
        %v549 = vpop.f32.mrf.mxu0
        %v550 = vadd.f32 %v367, %v549
        %v551 = vpop.f32.mrf.mxu0
        %v552 = vadd.f32 %v367, %v551
        %553 = vmatprep.mubr.f32.mxu0 0.0
        %554 = vmatmul.mubr.f32.gmra.mxu0 %v384
        %v555 = vpop.f32.mrf.mxu0
        %v556 = vadd.f32 %v372, %v555
        %v557 = vpop.f32.mrf.mxu0
        %v558 = vadd.f32 %v372, %v557
        %559 = vmatprep.mubr.f32.mxu0 0.0
        %560 = vmatmul.mubr.f32.gmra.mxu0 %v386
        %v561 = vpop.f32.mrf.mxu0
        %v562 = vadd.f32 %v377, %v561
        %v563 = vpop.f32.mrf.mxu0
        %v564 = vadd.f32 %v377, %v563
        %565 = vdwg.mxu0
        %v566 = vtanh.pop %v455
        %v567 = vtanh.pop %v457
        %v568 = vtanh.pop %v544
        %v569 = vtanh.pop %v546
        %v570 = vtanh.pop %v461
        %v571 = vtanh.pop %v463
        %v572 = vtanh.pop %v550
        %v573 = vtanh.pop %v552
        %v574 = vtanh.pop %v467
        %v575 = vtanh.pop %v469
        %v576 = vtanh.pop %v556
        %v577 = vtanh.pop %v558
        %v578 = vtanh.pop %v473
        %v579 = vtanh.pop %v475
        %v580 = vtanh.pop %v562
        %v581 = vtanh.pop %v564
        %v582 = vld [vmem:[%s1 + $0x40] sm:$0xff]
        %v583 = vld [vmem:[%s1 + $0x48] sm:$0xff]
        %v584 = vld [vmem:[%s1 + $0x50] sm:$0xff]
        %v585 = vld [vmem:[%s1 + $0x58] sm:$0xff]
        %587 = vset.pattern.permute.xlu0 32
        %588 = vperm.xlu0 %587, %v582
        %v589 = vpop.permute.xlu0 %588
        %592 = vset.pattern.permute.xlu0 32
        %593 = vperm.xlu0 %592, %v583
        %v594 = vpop.permute.xlu0 %593
        %597 = vset.pattern.permute.xlu0 32
        %598 = vperm.xlu0 %597, %v584
        %v599 = vpop.permute.xlu0 %598
        %602 = vset.pattern.permute.xlu0 32
        %603 = vperm.xlu0 %602, %v585
        %v604 = vpop.permute.xlu0 %603
        %v606 = vsel %vm379, %v582, 0
        %v608 = vsel %vm379, %v583, 0
        %v610 = vsel %vm379, %v584, 0
        %v612 = vsel %vm379, %v585, 0
        %614 = vmatprep.subr.mxu0 0.0
        %615 = vmatpush1.msra.mxu0 0.0
        %616 = vmatprep.subr.mxu0 0.0
        %617 = vmatpush1.msra.mxu0 0.0
        %618 = vmatprep.subr.mxu0 0.0
        %619 = vmatpush1.msra.mxu0 0.0
        %620 = vmatprep.subr.mxu0 0.0
        %621 = vmatpush1.msra.mxu0 0.0
        %622 = vmatprep.subr.mxu0 0.0
        %623 = vmatpush1.msra.mxu0 0.0
        %624 = vmatprep.subr.mxu0 0.0
        %625 = vmatpush1.msra.mxu0 0.0
        %626 = vmatprep.subr.mxu0 0.0
        %627 = vmatpush1.msra.mxu0 0.0
        %628 = vmatprep.subr.mxu0 0.0
        %629 = vmatpush1.msra.mxu0 0.0
        %630 = vmatprep.subr.mxu0 0.0
        %631 = vmatpush1.msra.mxu0 0.0
        %632 = vmatprep.subr.mxu0 0.0
        %633 = vmatpush1.msra.mxu0 0.0
        %634 = vmatprep.subr.mxu0 0.0
        %635 = vmatpush1.msra.mxu0 0.0
        %636 = vmatprep.subr.mxu0 0.0
        %637 = vmatpush1.msra.mxu0 0.0
        %638 = vmatprep.subr.mxu0 %v579
        %639 = vmatpush1.msra.mxu0 %v578
        %640 = vmatprep.subr.mxu0 %v575
        %641 = vmatpush1.msra.mxu0 %v574
        %642 = vmatprep.subr.mxu0 %v571
        %643 = vmatpush1.msra.mxu0 %v570
        %644 = vmatprep.subr.mxu0 %v567
        %645 = vmatpush1.msra.mxu0 %v566
        %646 = vmatprep.subr.mxu0 0.0
        %647 = vmatpush2.msra.mxu0 0.0
        %648 = vmatprep.subr.mxu0 0.0
        %649 = vmatpush2.msra.mxu0 0.0
        %650 = vmatprep.subr.mxu0 0.0
        %651 = vmatpush2.msra.mxu0 0.0
        %652 = vmatprep.subr.mxu0 0.0
        %653 = vmatpush2.msra.mxu0 0.0
        %654 = vmatprep.subr.mxu0 0.0
        %655 = vmatpush2.msra.mxu0 0.0
        %656 = vmatprep.subr.mxu0 0.0
        %657 = vmatpush2.msra.mxu0 0.0
        %658 = vmatprep.subr.mxu0 0.0
        %659 = vmatpush2.msra.mxu0 0.0
        %660 = vmatprep.subr.mxu0 0.0
        %661 = vmatpush2.msra.mxu0 0.0
        %662 = vmatprep.subr.mxu0 0.0
        %663 = vmatpush2.msra.mxu0 0.0
        %664 = vmatprep.subr.mxu0 0.0
        %665 = vmatpush2.msra.mxu0 0.0
        %666 = vmatprep.subr.mxu0 0.0
        %667 = vmatpush2.msra.mxu0 0.0
        %668 = vmatprep.subr.mxu0 0.0
        %669 = vmatpush2.msra.mxu0 0.0
        %670 = vmatprep.subr.mxu0 0.0
        %671 = vmatpush2.msra.mxu0 0.0
        %672 = vmatprep.subr.mxu0 0.0
        %673 = vmatpush2.msra.mxu0 0.0
        %674 = vmatprep.subr.mxu0 0.0
        %675 = vmatpush2.msra.mxu0 0.0
        %676 = vmatprep.subr.mxu0 0.0
        %677 = vmatpush2.msra.mxu0 0.0
        %678 = vmatprep.mubr.f32.mxu0 0.0
        %679 = vmatmul.mubr.f32.gmra.mxu0 %v606
        %v680 = vpop.f32.mrf.mxu0
        %v681 = vadd.f32 %v589, %v680
        %v682 = vpop.f32.mrf.mxu0
        %v683 = vadd.f32 %v589, %v682
        %684 = vmatprep.mubr.f32.mxu0 0.0
        %685 = vmatmul.mubr.f32.gmra.mxu0 %v608
        %v686 = vpop.f32.mrf.mxu0
        %v687 = vadd.f32 %v594, %v686
        %v688 = vpop.f32.mrf.mxu0
        %v689 = vadd.f32 %v594, %v688
        %690 = vmatprep.mubr.f32.mxu0 0.0
        %691 = vmatmul.mubr.f32.gmra.mxu0 %v610
        %v692 = vpop.f32.mrf.mxu0
        %v693 = vadd.f32 %v599, %v692
        %v694 = vpop.f32.mrf.mxu0
        %v695 = vadd.f32 %v599, %v694
        %696 = vmatprep.mubr.f32.mxu0 0.0
        %697 = vmatmul.mubr.f32.gmra.mxu0 %v612
        %v698 = vpop.f32.mrf.mxu0
        %v699 = vadd.f32 %v604, %v698
        %v700 = vpop.f32.mrf.mxu0
        %v701 = vadd.f32 %v604, %v700
        %702 = vdwg.mxu0
        %703 = vmatprep.subr.mxu0 0.0
        %704 = vmatpush1.msra.mxu0 0.0
        %705 = vmatprep.subr.mxu0 0.0
        %706 = vmatpush1.msra.mxu0 0.0
        %707 = vmatprep.subr.mxu0 0.0
        %708 = vmatpush1.msra.mxu0 0.0
        %709 = vmatprep.subr.mxu0 0.0
        %710 = vmatpush1.msra.mxu0 0.0
        %711 = vmatprep.subr.mxu0 0.0
        %712 = vmatpush1.msra.mxu0 0.0
        %713 = vmatprep.subr.mxu0 0.0
        %714 = vmatpush1.msra.mxu0 0.0
        %715 = vmatprep.subr.mxu0 0.0
        %716 = vmatpush1.msra.mxu0 0.0
        %717 = vmatprep.subr.mxu0 0.0
        %718 = vmatpush1.msra.mxu0 0.0
        %719 = vmatprep.subr.mxu0 0.0
        %720 = vmatpush1.msra.mxu0 0.0
        %721 = vmatprep.subr.mxu0 0.0
        %722 = vmatpush1.msra.mxu0 0.0
        %723 = vmatprep.subr.mxu0 0.0
        %724 = vmatpush1.msra.mxu0 0.0
        %725 = vmatprep.subr.mxu0 0.0
        %726 = vmatpush1.msra.mxu0 0.0
        %727 = vmatprep.subr.mxu0 %v581
        %728 = vmatpush1.msra.mxu0 %v580
        %729 = vmatprep.subr.mxu0 %v577
        %730 = vmatpush1.msra.mxu0 %v576
        %731 = vmatprep.subr.mxu0 %v573
        %732 = vmatpush1.msra.mxu0 %v572
        %733 = vmatprep.subr.mxu0 %v569
        %734 = vmatpush1.msra.mxu0 %v568
        %735 = vmatprep.subr.mxu0 0.0
        %736 = vmatpush2.msra.mxu0 0.0
        %737 = vmatprep.subr.mxu0 0.0
        %738 = vmatpush2.msra.mxu0 0.0
        %739 = vmatprep.subr.mxu0 0.0
        %740 = vmatpush2.msra.mxu0 0.0
        %741 = vmatprep.subr.mxu0 0.0
        %742 = vmatpush2.msra.mxu0 0.0
        %743 = vmatprep.subr.mxu0 0.0
        %744 = vmatpush2.msra.mxu0 0.0
        %745 = vmatprep.subr.mxu0 0.0
        %746 = vmatpush2.msra.mxu0 0.0
        %747 = vmatprep.subr.mxu0 0.0
        %748 = vmatpush2.msra.mxu0 0.0
        %749 = vmatprep.subr.mxu0 0.0
        %750 = vmatpush2.msra.mxu0 0.0
        %751 = vmatprep.subr.mxu0 0.0
        %752 = vmatpush2.msra.mxu0 0.0
        %753 = vmatprep.subr.mxu0 0.0
        %754 = vmatpush2.msra.mxu0 0.0
        %755 = vmatprep.subr.mxu0 0.0
        %756 = vmatpush2.msra.mxu0 0.0
        %757 = vmatprep.subr.mxu0 0.0
        %758 = vmatpush2.msra.mxu0 0.0
        %759 = vmatprep.subr.mxu0 0.0
        %760 = vmatpush2.msra.mxu0 0.0
        %761 = vmatprep.subr.mxu0 0.0
        %762 = vmatpush2.msra.mxu0 0.0
        %763 = vmatprep.subr.mxu0 0.0
        %764 = vmatpush2.msra.mxu0 0.0
        %765 = vmatprep.subr.mxu0 0.0
        %766 = vmatpush2.msra.mxu0 0.0
        %767 = vmatprep.mubr.f32.mxu0 0.0
        %768 = vmatmul.mubr.f32.gmra.mxu0 %v606
        %v769 = vpop.f32.mrf.mxu0
        %v770 = vadd.f32 %v589, %v769
        %v771 = vpop.f32.mrf.mxu0
        %v772 = vadd.f32 %v589, %v771
        %773 = vmatprep.mubr.f32.mxu0 0.0
        %774 = vmatmul.mubr.f32.gmra.mxu0 %v608
        %v775 = vpop.f32.mrf.mxu0
        %v776 = vadd.f32 %v594, %v775
        %v777 = vpop.f32.mrf.mxu0
        %v778 = vadd.f32 %v594, %v777
        %779 = vmatprep.mubr.f32.mxu0 0.0
        %780 = vmatmul.mubr.f32.gmra.mxu0 %v610
        %v781 = vpop.f32.mrf.mxu0
        %v782 = vadd.f32 %v599, %v781
        %v783 = vpop.f32.mrf.mxu0
        %v784 = vadd.f32 %v599, %v783
        %785 = vmatprep.mubr.f32.mxu0 0.0
        %786 = vmatmul.mubr.f32.gmra.mxu0 %v612
        %v787 = vpop.f32.mrf.mxu0
        %v788 = vadd.f32 %v604, %v787
        %v789 = vpop.f32.mrf.mxu0
        %v790 = vadd.f32 %v604, %v789
        %791 = vdwg.mxu0
        %v792 = vtanh.pop %v681
        %v793 = vtanh.pop %v683
        %v794 = vtanh.pop %v770
        %v795 = vtanh.pop %v772
        %v796 = vtanh.pop %v687
        %v797 = vtanh.pop %v689
        %v798 = vtanh.pop %v776
        %v799 = vtanh.pop %v778
        %v800 = vtanh.pop %v693
        %v801 = vtanh.pop %v695
        %v802 = vtanh.pop %v782
        %v803 = vtanh.pop %v784
        %v804 = vtanh.pop %v699
        %v805 = vtanh.pop %v701
        %v806 = vtanh.pop %v788
        %v807 = vtanh.pop %v790
        %v808 = vld [vmem:[%s1 + $0x60] sm:$0x1]
        %810 = vset.pattern.permute.xlu0 32
        %811 = vperm.xlu0 %810, %v808
        %v812 = vpop.permute.xlu0 %811
        %v814 = vsel %vm379, %v808, 0
        %816 = vmatprep.subr.mxu0 0.0
        %817 = vmatpush1.msra.mxu0 0.0
        %818 = vmatprep.subr.mxu0 0.0
        %819 = vmatpush1.msra.mxu0 0.0
        %820 = vmatprep.subr.mxu0 0.0
        %821 = vmatpush1.msra.mxu0 0.0
        %822 = vmatprep.subr.mxu0 0.0
        %823 = vmatpush1.msra.mxu0 0.0
        %824 = vmatprep.subr.mxu0 0.0
        %825 = vmatpush1.msra.mxu0 0.0
        %826 = vmatprep.subr.mxu0 0.0
        %827 = vmatpush1.msra.mxu0 0.0
        %828 = vmatprep.subr.mxu0 0.0
        %829 = vmatpush1.msra.mxu0 0.0
        %830 = vmatprep.subr.mxu0 0.0
        %831 = vmatpush1.msra.mxu0 0.0
        %832 = vmatprep.subr.mxu0 0.0
        %833 = vmatpush1.msra.mxu0 0.0
        %834 = vmatprep.subr.mxu0 0.0
        %835 = vmatpush1.msra.mxu0 0.0
        %836 = vmatprep.subr.mxu0 0.0
        %837 = vmatpush1.msra.mxu0 0.0
        %838 = vmatprep.subr.mxu0 0.0
        %839 = vmatpush1.msra.mxu0 0.0
        %840 = vmatprep.subr.mxu0 %v805
        %841 = vmatpush1.msra.mxu0 %v804
        %842 = vmatprep.subr.mxu0 %v801
        %843 = vmatpush1.msra.mxu0 %v800
        %844 = vmatprep.subr.mxu0 %v797
        %845 = vmatpush1.msra.mxu0 %v796
        %846 = vmatprep.subr.mxu0 %v793
        %847 = vmatpush1.msra.mxu0 %v792
        %848 = vmatprep.subr.mxu0 0.0
        %849 = vmatpush2.msra.mxu0 0.0
        %850 = vmatprep.subr.mxu0 0.0
        %851 = vmatpush2.msra.mxu0 0.0
        %852 = vmatprep.subr.mxu0 0.0
        %853 = vmatpush2.msra.mxu0 0.0
        %854 = vmatprep.subr.mxu0 0.0
        %855 = vmatpush2.msra.mxu0 0.0
        %856 = vmatprep.subr.mxu0 0.0
        %857 = vmatpush2.msra.mxu0 0.0
        %858 = vmatprep.subr.mxu0 0.0
        %859 = vmatpush2.msra.mxu0 0.0
        %860 = vmatprep.subr.mxu0 0.0
        %861 = vmatpush2.msra.mxu0 0.0
        %862 = vmatprep.subr.mxu0 0.0
        %863 = vmatpush2.msra.mxu0 0.0
        %864 = vmatprep.subr.mxu0 0.0
        %865 = vmatpush2.msra.mxu0 0.0
        %866 = vmatprep.subr.mxu0 0.0
        %867 = vmatpush2.msra.mxu0 0.0
        %868 = vmatprep.subr.mxu0 0.0
        %869 = vmatpush2.msra.mxu0 0.0
        %870 = vmatprep.subr.mxu0 0.0
        %871 = vmatpush2.msra.mxu0 0.0
        %872 = vmatprep.subr.mxu0 0.0
        %873 = vmatpush2.msra.mxu0 0.0
        %874 = vmatprep.subr.mxu0 0.0
        %875 = vmatpush2.msra.mxu0 0.0
        %876 = vmatprep.subr.mxu0 0.0
        %877 = vmatpush2.msra.mxu0 0.0
        %878 = vmatprep.subr.mxu0 0.0
        %879 = vmatpush2.msra.mxu0 0.0
        %880 = vmatprep.mubr.f32.mxu0 0.0
        %881 = vmatmul.mubr.f32.gmra.mxu0 %v814
        %v882 = vpop.f32.mrf.mxu0
        %v883 = vadd.f32 %v812, %v882
        %v884 = vpop.f32.mrf.mxu0
        %v885 = vadd.f32 %v812, %v884
        %886 = vdwg.mxu0
        %887 = vmatprep.subr.mxu0 0.0
        %888 = vmatpush1.msra.mxu0 0.0
        %889 = vmatprep.subr.mxu0 0.0
        %890 = vmatpush1.msra.mxu0 0.0
        %891 = vmatprep.subr.mxu0 0.0
        %892 = vmatpush1.msra.mxu0 0.0
        %893 = vmatprep.subr.mxu0 0.0
        %894 = vmatpush1.msra.mxu0 0.0
        %895 = vmatprep.subr.mxu0 0.0
        %896 = vmatpush1.msra.mxu0 0.0
        %897 = vmatprep.subr.mxu0 0.0
        %898 = vmatpush1.msra.mxu0 0.0
        %899 = vmatprep.subr.mxu0 0.0
        %900 = vmatpush1.msra.mxu0 0.0
        %901 = vmatprep.subr.mxu0 0.0
        %902 = vmatpush1.msra.mxu0 0.0
        %903 = vmatprep.subr.mxu0 0.0
        %904 = vmatpush1.msra.mxu0 0.0
        %905 = vmatprep.subr.mxu0 0.0
        %906 = vmatpush1.msra.mxu0 0.0
        %907 = vmatprep.subr.mxu0 0.0
        %908 = vmatpush1.msra.mxu0 0.0
        %909 = vmatprep.subr.mxu0 0.0
        %910 = vmatpush1.msra.mxu0 0.0
        %911 = vmatprep.subr.mxu0 %v807
        %912 = vmatpush1.msra.mxu0 %v806
        %913 = vmatprep.subr.mxu0 %v803
        %914 = vmatpush1.msra.mxu0 %v802
        %915 = vmatprep.subr.mxu0 %v799
        %916 = vmatpush1.msra.mxu0 %v798
        %917 = vmatprep.subr.mxu0 %v795
        %918 = vmatpush1.msra.mxu0 %v794
        %919 = vmatprep.subr.mxu0 0.0
        %920 = vmatpush2.msra.mxu0 0.0
        %921 = vmatprep.subr.mxu0 0.0
        %922 = vmatpush2.msra.mxu0 0.0
        %923 = vmatprep.subr.mxu0 0.0
        %924 = vmatpush2.msra.mxu0 0.0
        %925 = vmatprep.subr.mxu0 0.0
        %926 = vmatpush2.msra.mxu0 0.0
        %927 = vmatprep.subr.mxu0 0.0
        %928 = vmatpush2.msra.mxu0 0.0
        %929 = vmatprep.subr.mxu0 0.0
        %930 = vmatpush2.msra.mxu0 0.0
        %931 = vmatprep.subr.mxu0 0.0
        %932 = vmatpush2.msra.mxu0 0.0
        %933 = vmatprep.subr.mxu0 0.0
        %934 = vmatpush2.msra.mxu0 0.0
        %935 = vmatprep.subr.mxu0 0.0
        %936 = vmatpush2.msra.mxu0 0.0
        %937 = vmatprep.subr.mxu0 0.0
        %938 = vmatpush2.msra.mxu0 0.0
        %939 = vmatprep.subr.mxu0 0.0
        %940 = vmatpush2.msra.mxu0 0.0
        %941 = vmatprep.subr.mxu0 0.0
        %942 = vmatpush2.msra.mxu0 0.0
        %943 = vmatprep.subr.mxu0 0.0
        %944 = vmatpush2.msra.mxu0 0.0
        %945 = vmatprep.subr.mxu0 0.0
        %946 = vmatpush2.msra.mxu0 0.0
        %947 = vmatprep.subr.mxu0 0.0
        %948 = vmatpush2.msra.mxu0 0.0
        %949 = vmatprep.subr.mxu0 0.0
        %950 = vmatpush2.msra.mxu0 0.0
        %951 = vmatprep.mubr.f32.mxu0 0.0
        %952 = vmatmul.mubr.f32.gmra.mxu0 %v814
        %v953 = vpop.f32.mrf.mxu0
        %v954 = vadd.f32 %v812, %v953
        %v955 = vpop.f32.mrf.mxu0
        %v956 = vadd.f32 %v812, %v955
        %957 = vdwg.mxu0
        %v962 = vcombine.low %v883, %v885
        %v963 = vcombine.low %v954, %v956
        %v965 = vunpack.c.l.s4 1966171168
        %v966 = vunpack.c.0.s8 %v965
        %v967 = vlaneseq
        %v968 = vshrl.u32 %v967, 7
        %v969 = vsub.s32 %v966, %v968
        %v970 = vrot.slane %v962, %v969
        %v972 = vunpack.c.l.s4 1966171168
        %v973 = vunpack.c.0.s8 %v972
        %v974 = vlaneseq
        %v975 = vshrl.u32 %v974, 7
        %v976 = vsub.s32 %v973, %v975
        %v977 = vrot.slane %v963, %v976
        %v978 = vcombine.low %v970, %v977
        %v980 = vunpack.c.l.s4 1966171168
        %v981 = vunpack.c.0.s8 %v980
        %v982 = vlaneseq
        %v983 = vshrl.u32 %v982, 7
        %v984 = vsub.s32 %v981, %v983
        %v985 = vrot.slane %v978, %v984
        %v987 = vlaneseq
        %vm988 = vcmp.ge.s32.totalorder %v987, 0
        %vm989 = vcmp.lt.s32.totalorder %v987, 512
        %vm990 = vmand %vm988, %vm989
        %991 = vst.msk [vmem:[%s137] sm:$0xf] %vm990, %v985
        %s992 = sand.u32 %s71, 1
        %s993 = scalar_lea.sflag [#allocation3], %s992
        %s994 = sand.u32 %s71, 1
        %s995 = smul.addr %s994, 4
        %s996 = scalar_lea.vmem [#allocation2], %s995
        // Predicated region
        $region29: #{tpu_custom_call.1} parent=27 // pred_check
          %p997 = pneg %p81
        $region30: #{tpu_custom_call.1} parent=27 // pred_check_branch
          %999 = sbr.rel (%p997) target = $region32
        $region31: #{tpu_custom_call.1} parent=27 // pred_region
          %s1000 = smul.u32 4, %s16
          %s1002 = ssub.s32 64, 64
          %1003 = vsyncadd %s993, %s1002
          %s1004 = smul.addr %s1000, 16
          %s1005 = scalar_lea.hbm %s2, %s1004
          %s1007 = sshll.u32 %s996, 4
          %s1008 = int_to_ptr.vmem [resolvable:$true] %s1007
          %1010 = dma.vmem_to_hbm [thread:$0]  %s1008, 64, %s1005, %s993
        $region32: #{tpu_custom_call.1} parent=27 // pred_fallthru
          _
      $region28: #{tpu_custom_call.1} parent=5 // pred_fallthru
        _
      %p1011 = scmp.le.s32.totalorder 2, %s11
      // Predicated region
      $region33: #{tpu_custom_call.1} parent=5 // pred_check
        %p1012 = pneg %p1011
      $region34: #{tpu_custom_call.1} parent=5 // pred_check_branch
        %1014 = sbr.rel (%p1012) target = $region36
      $region35: #{tpu_custom_call.1} parent=5 // pred_region
        %s1015 = ssub.s32 %s11, 2
        // Predicated region
        $region37: #{tpu_custom_call.1} parent=35 // pred_check
          %p1016 = pneg %p87
        $region38: #{tpu_custom_call.1} parent=35 // pred_check_branch
          %1018 = sbr.rel (%p1016) target = $region40
        $region39: #{tpu_custom_call.1} parent=35 // pred_region
          %s1019 = sand.u32 %s72, 1
          %s1020 = scalar_lea.sflag [#allocation3], %s1019
          %s1021 = sand.u32 %s72, 1
          %s1022 = smul.addr %s1021, 4
          %s1023 = scalar_lea.vmem [#allocation2], %s1022
          %1024 = dma.done %s1020, 64
        $region40: #{tpu_custom_call.1} parent=35 // pred_fallthru
          _
      $region36: #{tpu_custom_call.1} parent=5 // pred_fallthru
        _
    $region6: #{tpu_custom_call.1} parent=1 // loop_footer
      %s15 = sadd.s32 1, %s11
    $region7: #{tpu_custom_call.1} parent=1 // loop_footer_branch
      %10 = sbr.rel target = $region3
    $region8: #{tpu_custom_call.1} parent=1 // loop_exit
      _
    %1025 = vsyncpa [#allocation3], 1
    %s1026 = scalar_lea.sflag [#allocation3], 1
    %1027 = vsyncpa %s1026, 1

</llo_original>
